<compile_context>
chip_gen: v7x
topology: tpu7x:2x2x1
jax: 0.10.0
libtpu: 0.0.40
codegen_flags: <defaults>
</compile_context>

<pallas_src>
import functools

import jax
import jax.numpy as jnp
from jax import lax
from jax.experimental import pallas as pl
from jax.experimental.pallas import tpu as pltpu

LANE = 128
SUBLANE = 8
# 8192 rows x 128 lanes x 4 B = 4 MiB per f32 input block; 2 inputs x 2
# pipeline buffers = 16 MiB, under the explicit 32 MiB VMEM limit set below.
TARGET_BLOCK_ROWS = 8192
# Inner reduction chunk: (512, 128) f32 = 256 KiB live intermediate instead of
# a whole-block multi-MiB temporary; keeps live ranges / VMEM traffic bounded.
CHUNK_ROWS = 512


def _num_tensorcores():
    """Best-effort TensorCores-per-chip detection (v7x=2, v5e/v6e=1)."""
    info = None
    try:
        info = pltpu.get_tpu_info()
    except Exception:
        info = None
    if info is not None:
        for attr in ("num_cores", "core_count", "tensorcores_per_chip",
                     "num_tensorcores"):
            n = getattr(info, attr, None)
            try:
                n = int(n)
            except (TypeError, ValueError):
                continue
            if n >= 1:
                return min(n, 2)
    try:
        kind = jax.devices()[0].device_kind.lower()
    except Exception:
        kind = ""
    if "v7" in kind or "7x" in kind:
        return 2
    return 1


def _mse_partial_kernel(x_ref, t_ref, acc_ref, *, block_rows, chunk_rows,
                        steps_per_partial, m_rows, num_blocks, needs_mask):
    # Grid = (partial, step). `step` is the "arbitrary" reduction axis; the
    # output block index depends only on `partial`, so acc_ref (1, 8, 128)
    # stays resident in VMEM across the inner loop (accumulator pattern).
    @pl.when(pl.program_id(1) == 0)
    def _init():
        acc_ref[...] = jnp.zeros_like(acc_ref)

    n_chunks = block_rows // chunk_rows

    def accumulate(mask_row_start=None):
        # Chunked partial reduce: each iteration streams a (chunk_rows, 128)
        # slab through sub/mul and folds it onto a single (8, 128) vreg carry
        # with pure VPU adds; no whole-block d / d^2 temporaries.
        def body(c, part):
            r0 = pl.multiple_of(c * chunk_rows, chunk_rows)
            d = (x_ref[pl.ds(r0, chunk_rows), :].astype(jnp.float32)
                 - t_ref[pl.ds(r0, chunk_rows), :].astype(jnp.float32))
            if mask_row_start is not None:
                # Zero rows past the real end of the flattened tensor (partial
                # last block / fully out-of-range clamped duplicate blocks).
                row = lax.broadcasted_iota(jnp.int32, (chunk_rows, LANE), 0)
                d = jnp.where(mask_row_start + r0 + row < m_rows, d, 0.0)
            d2 = d * d
            return part + jnp.sum(
                d2.reshape(chunk_rows // SUBLANE, SUBLANE, LANE), axis=0)

        part = lax.fori_loop(0, n_chunks, body,
                             jnp.zeros((SUBLANE, LANE), jnp.float32))
        acc_ref[...] += part.reshape(1, SUBLANE, LANE)

    if not needs_mask:
        # Exact tiling: every block is full, never touch the mask path.
        accumulate()
    else:
        block_idx = pl.program_id(0) * steps_per_partial + pl.program_id(1)

        # Interior blocks are always full -> mask-free accumulate.
        @pl.when(block_idx < num_blocks - 1)
        def _interior():
            accumulate()

        # Only the last real block and clamped out-of-range duplicates pay for
        # the iota + compare + select.
        @pl.when(block_idx >= num_blocks - 1)
        def _tail():
            accumulate(mask_row_start=block_idx * block_rows)


def content_loss_forward(x, target):
    """ContentLoss.forward: loss = mse_loss(input, target); returns (input, loss)."""
    assert x.shape == target.shape, "input / target shape mismatch"
    total = x.size
    # Conv feature maps (N*C*H*W) are a multiple of 128 in practice.
    # TODO(synk): arbitrary element counts would additionally need a lane mask.
    assert total % LANE == 0, "total element count must be a multiple of 128"

    m_rows = total // LANE
    x2 = x.reshape(m_rows, LANE)
    t2 = target.reshape(m_rows, LANE)

    # Dtype-specific minimum sublane multiple: f32 -> 8, bf16 -> 16, 8-bit -> 32.
    def _mult(dt):
        return {4: 8, 2: 16, 1: 32}.get(jnp.dtype(dt).itemsize, SUBLANE)

    sub_mult = max(_mult(x.dtype), _mult(target.dtype), SUBLANE)

    # Small inputs get one (rounded-up) block; large inputs get 4 MiB f32 blocks.
    block_rows = min(TARGET_BLOCK_ROWS,
                     ((m_rows + sub_mult - 1) // sub_mult) * sub_mult)
    num_blocks = (m_rows + block_rows - 1) // block_rows

    # One partial per TensorCore (leading "parallel" axis); never more partials
    # than blocks, so single-TC chips / tiny inputs don't DMA wasted duplicates.
    num_partials = max(1, min(_num_tensorcores(), num_blocks))
    steps_per_partial = (num_blocks + num_partials - 1) // num_partials
    needs_mask = (num_partials * steps_per_partial * block_rows) != m_rows

    chunk_rows = CHUNK_ROWS if block_rows % CHUNK_ROWS == 0 else block_rows

    def in_index_map(c, i):
        # Clamp so a fully out-of-range block (uneven split across partials)
        # re-reads the last valid block instead of DMA-ing out of bounds; the
        # in-kernel tail mask zeroes its contribution.
        return (jnp.minimum(c * steps_per_partial + i, num_blocks - 1), 0)

    kernel = functools.partial(
        _mse_partial_kernel,
        block_rows=block_rows,
        chunk_rows=chunk_rows,
        steps_per_partial=steps_per_partial,
        m_rows=m_rows,
        num_blocks=num_blocks,
        needs_mask=needs_mask,
    )

    bytes_in = total * (jnp.dtype(x.dtype).itemsize
                        + jnp.dtype(target.dtype).itemsize)

    partials = pl.pallas_call(
        kernel,
        out_shape=jax.ShapeDtypeStruct((num_partials, SUBLANE, LANE),
                                       jnp.float32),
        grid_spec=pltpu.PrefetchScalarGridSpec(
            num_scalar_prefetch=0,
            grid=(num_partials, steps_per_partial),
            in_specs=[
                pl.BlockSpec((block_rows, LANE), in_index_map),
                pl.BlockSpec((block_rows, LANE), in_index_map),
            ],
            out_specs=pl.BlockSpec((1, SUBLANE, LANE), lambda c, i: (c, 0, 0)),
        ),
        compiler_params=pltpu.CompilerParams(
            # TODO(synk): profile per-TC occupancy on v7x; if plain "parallel"
            # does not shard the partial axis across both TensorCores, switch
            # it to pltpu.CORE_PARALLEL.
            dimension_semantics=("parallel", "arbitrary"),
            vmem_limit_bytes=32 << 20,
        ),
        cost_estimate=pl.CostEstimate(
            flops=3 * total,
            transcendentals=0,
            bytes_accessed=bytes_in + num_partials * SUBLANE * LANE * 4,
        ),
    )(x2, t2)

    # Single cross-lane/sublane reduce + mean normalization on a tiny
    # (num_partials, 8, 128) array, done once outside the kernel.
    loss = jnp.sum(partials) / jnp.float32(total)

    # forward() returns the input unchanged (identity pass-through).
    return x, loss


if __name__ == "__main__":
    key = jax.random.PRNGKey(0)
    k1, k2 = jax.random.split(key)

    # Small NCHW shapes consistent with typical ContentLoss usage.
    N, C, H, W = 2, 4, 16, 16
    x = jax.random.normal(k1, (N, C, H, W), dtype=jnp.float32)
    target = jax.random.normal(k2, (N, C, H, W), dtype=jnp.float32)

    out, loss = content_loss_forward(x, target)
    out = jax.block_until_ready(out)
    loss = jax.block_until_ready(loss)

    # Reference check against plain-JAX MSE (== F.mse_loss default 'mean').
    ref = jnp.mean((x - target) ** 2)
    assert jnp.allclose(loss, ref, rtol=1e-5, atol=1e-6), (loss, ref)
    assert jnp.array_equal(out, x)  # forward returns input unchanged

    # bf16 path: inputs stream at half the HBM bytes, accumulation stays f32.
    xb = x.astype(jnp.bfloat16)
    tb = target.astype(jnp.bfloat16)
    out_b, loss_b = content_loss_forward(xb, tb)
    loss_b = jax.block_until_ready(loss_b)
    ref_b = jnp.mean((xb.astype(jnp.float32) - tb.astype(jnp.float32)) ** 2)
    assert jnp.allclose(loss_b, ref_b, rtol=1e-5, atol=1e-6), (loss_b, ref_b)
    assert jnp.array_equal(out_b, xb)

    print("KERNEL_OK")
</pallas_src>

<mosaic_0001>
module attributes {stable_mosaic.version = 11 : i64} {
  func.func @_mse_partial_kernel(%arg0: i32, %arg1: i32, %arg2: memref<16x128xf32, #tpu.memory_space<vmem>>, %arg3: memref<16x128xf32, #tpu.memory_space<vmem>>, %arg4: memref<1x8x128xf32, #tpu.memory_space<vmem>>) attributes {dimension_semantics = [#tpu.dimension_semantics<parallel>, #tpu.dimension_semantics<arbitrary>], iteration_bounds = array<i64: 1, 1>, scalar_prefetch = 0 : i64, scratch_operands = 0 : i64, tpu.core_type = #tpu.core_type<tc>, window_params = [{transform_indices = @transform_0, window_bounds = array<i64: 16, 128>}, {transform_indices = @transform_1, window_bounds = array<i64: 16, 128>}, {transform_indices = @transform_2, window_bounds = array<i64: 1, 8, 128>}]} {
    %c0_i32 = arith.constant 0 : i32
    %0 = arith.cmpi eq, %arg1, %c0_i32 : i32
    %1 = arith.extui %0 : i1 to i32
    %c0_i32_0 = arith.constant 0 : i32
    %2 = arith.cmpi ne, %1, %c0_i32_0 : i32
    scf.if %2 {
      %cst_10 = arith.constant 0.000000e+00 : f32
      %19 = vector.broadcast %cst_10 : f32 to vector<1x8x128xf32>
      %c0_11 = arith.constant 0 : index
      %c0_12 = arith.constant 0 : index
      %c0_13 = arith.constant 0 : index
      %20 = vector.load %arg4[%c0_11, %c0_12, %c0_13] : memref<1x8x128xf32, #tpu.memory_space<vmem>>, vector<1x8x128xf32>
      tpu.vector_store %arg4[%c0_11, %c0_12, %c0_13], %19 {strides = array<i32>} : memref<1x8x128xf32, #tpu.memory_space<vmem>>, vector<1x8x128xf32>,
    } else {
    }
    %cst = arith.constant 0.000000e+00 : f32
    %3 = vector.broadcast %cst : f32 to vector<8x128xf32>
    %c0_i32_1 = arith.constant 0 : i32
    %c16_i32 = arith.constant 16 : i32
    %4 = arith.muli %c0_i32_1, %c16_i32 : i32
    %5 = tpu.assume_multiple %4, 16 : i32
    %6 = arith.index_cast %5 : i32 to index
    %c0 = arith.constant 0 : index
    %7 = vector.load %arg2[%6, %c0] : memref<16x128xf32, #tpu.memory_space<vmem>>, vector<16x128xf32>
    %8 = arith.index_cast %5 : i32 to index
    %c0_2 = arith.constant 0 : index
    %9 = vector.load %arg3[%8, %c0_2] : memref<16x128xf32, #tpu.memory_space<vmem>>, vector<16x128xf32>
    %10 = arith.subf %7, %9 : vector<16x128xf32>
    %11 = arith.mulf %10, %10 : vector<16x128xf32>
    %12 = vector.shape_cast %11 : vector<16x128xf32> to vector<2x8x128xf32>
    %cst_3 = arith.constant dense<0.000000e+00> : vector<8x128xf32>
    %13 = vector.multi_reduction <add>, %12, %cst_3 [0] : vector<2x8x128xf32> to vector<8x128xf32>
    %14 = arith.addf %3, %13 : vector<8x128xf32>
    %c1_i32 = arith.constant 1 : i32
    %c0_4 = arith.constant 0 : index
    %c0_5 = arith.constant 0 : index
    %c0_6 = arith.constant 0 : index
    %15 = vector.load %arg4[%c0_4, %c0_5, %c0_6] : memref<1x8x128xf32, #tpu.memory_space<vmem>>, vector<1x8x128xf32>
    %16 = vector.shape_cast %14 : vector<8x128xf32> to vector<1x8x128xf32>
    %17 = arith.addf %15, %16 : vector<1x8x128xf32>
    %c0_7 = arith.constant 0 : index
    %c0_8 = arith.constant 0 : index
    %c0_9 = arith.constant 0 : index
    %18 = vector.load %arg4[%c0_7, %c0_8, %c0_9] : memref<1x8x128xf32, #tpu.memory_space<vmem>>, vector<1x8x128xf32>
    tpu.vector_store %arg4[%c0_7, %c0_8, %c0_9], %17 {strides = array<i32>} : memref<1x8x128xf32, #tpu.memory_space<vmem>>, vector<1x8x128xf32>,
    return
  }
  func.func @transform_0(%arg0: i32, %arg1: i32) -> (i32, i32) {
    %c1_i32 = arith.constant 1 : i32
    %0 = arith.muli %arg0, %c1_i32 : i32
    %1 = arith.addi %0, %arg1 : i32
    %c0_i32 = arith.constant 0 : i32
    %2 = arith.minsi %1, %c0_i32 : i32
    %c0_i32_0 = arith.constant 0 : i32
    %c0_i32_1 = arith.constant 0 : i32
    return %2, %c0_i32_0 : i32, i32
  }
  func.func @transform_1(%arg0: i32, %arg1: i32) -> (i32, i32) {
    %c1_i32 = arith.constant 1 : i32
    %0 = arith.muli %arg0, %c1_i32 : i32
    %1 = arith.addi %0, %arg1 : i32
    %c0_i32 = arith.constant 0 : i32
    %2 = arith.minsi %1, %c0_i32 : i32
    %c0_i32_0 = arith.constant 0 : i32
    %c0_i32_1 = arith.constant 0 : i32
    return %2, %c0_i32_0 : i32, i32
  }
  func.func @transform_2(%arg0: i32, %arg1: i32) -> (i32, i32, i32) {
    %c0_i32 = arith.constant 0 : i32
    %c0_i32_0 = arith.constant 0 : i32
    %c0_i32_1 = arith.constant 0 : i32
    return %arg0, %c0_i32, %c0_i32_0 : i32, i32, i32
  }
}

</mosaic_0001>

<llo_original>
// kernel: tpu_custom_call.1
$region0: #{tpu_custom_call.1}
  #allocation0 [shape = 'u32[]', space=smem, size = 0x4, offset = 0x4, fixed_abs, tag = 'smem constant byte address 0x4 - core index']
  #allocation1 [shape = 'u32[144,128]{1,0:T(1,128)}', space=vmem, size = 0x12000, scoped, tag = 'internal scratch']
  %s0 = inlined_call_operand.hbm [shape: f32[16,128], index: 0, kind: input, shape index: {}]
  %s1 = inlined_call_operand.hbm [shape: f32[16,128], index: 1, kind: input, shape index: {}]
  %s2 = inlined_call_operand.hbm [shape: f32[1,8,128], index: 2, kind: output, shape index: {}]
  %s3 = sld [smem:[#allocation0]]
  $region30: #{tpu_custom_call.1} parent=0
    _
  %s5 = ssub.s32 1, %s3
  %s6 = scalar_select 0, %s5, %s3
  $region1: #{tpu_custom_call.1} parent=0
    #allocation2 [shape = 'u8[8192]{0}', space=vmem, size = 0x2000, scoped, tag = 'input window, operand 0, single buffered']
    #allocation3 [shape = 's32[1]{0}', space=sflag, size = 0x4, scoped, tag = 'scoped memory for tpu_custom_call.1']
    #allocation4 [shape = 's32[1]{0}', space=sflag, size = 0x4, scoped, tag = 'scoped memory for tpu_custom_call.1']
    #allocation5 [shape = 'u8[8192]{0}', space=vmem, size = 0x2000, scoped, tag = 'input window, operand 1, single buffered']
    #allocation6 [shape = 's32[1]{0}', space=sflag, size = 0x4, scoped, tag = 'scoped memory for tpu_custom_call.1']
    #allocation7 [shape = 'u8[4096]{0}', space=vmem, size = 0x1000, scoped, tag = 'output window, operand 0, single buffered']
    %7 = vsyncpa [#allocation3], 0
    %8 = vsyncpa [#allocation6], 0
    %9 = vsyncpa [#allocation4], 0
    // Predicated region
    $region2: #{tpu_custom_call.1} parent=1 // pred_check
      _
    $region3: #{tpu_custom_call.1} parent=1 // pred_check_branch
      %11 = sbr.rel (0) target = $region5
    $region4: #{tpu_custom_call.1} parent=1 // pred_region
      %s12 = sadd.s32 0, 0
      %p13 = scmp.lt.s32.totalorder %s12, 0
      %s14 = scalar_select %p13, %s12, 0
      %s15 = smul.u32 2, %s14
      %s17 = ssub.s32 256, 256
      %18 = vsyncadd [#allocation3], %s17
      %s19 = smul.addr %s15, 128
      %s20 = scalar_lea.hbm %s0, %s19
      %s21 = sshll.u32 [#allocation2], 4
      %s22 = int_to_ptr.vmem [resolvable:$true] %s21
      %27 = dma.hbm_to_vmem [thread:$0]  %s20, 256, %s22, [#allocation3], 128, 128, 8
    $region5: #{tpu_custom_call.1} parent=1 // pred_fallthru
      _
    // Predicated region
    $region6: #{tpu_custom_call.1} parent=1 // pred_check
      _
    $region7: #{tpu_custom_call.1} parent=1 // pred_check_branch
      %29 = sbr.rel (0) target = $region9
    $region8: #{tpu_custom_call.1} parent=1 // pred_region
      %s30 = sadd.s32 0, 0
      %p31 = scmp.lt.s32.totalorder %s30, 0
      %s32 = scalar_select %p31, %s30, 0
      %s33 = smul.u32 2, %s32
      %s35 = ssub.s32 256, 256
      %36 = vsyncadd [#allocation6], %s35
      %s37 = smul.addr %s33, 128
      %s38 = scalar_lea.hbm %s1, %s37
      %s39 = sshll.u32 [#allocation5], 4
      %s40 = int_to_ptr.vmem [resolvable:$true] %s39
      %45 = dma.hbm_to_vmem [thread:$0]  %s38, 256, %s40, [#allocation6], 128, 128, 8
    $region9: #{tpu_custom_call.1} parent=1 // pred_fallthru
      _
    // Predicated region
    $region10: #{tpu_custom_call.1} parent=1 // pred_check
      _
    $region11: #{tpu_custom_call.1} parent=1 // pred_check_branch
      %47 = sbr.rel (0) target = $region13
    $region12: #{tpu_custom_call.1} parent=1 // pred_region
      %48 = dma.done [#allocation3], 256
    $region13: #{tpu_custom_call.1} parent=1 // pred_fallthru
      _
    // Predicated region
    $region14: #{tpu_custom_call.1} parent=1 // pred_check
      _
    $region15: #{tpu_custom_call.1} parent=1 // pred_check_branch
      %50 = sbr.rel (0) target = $region17
    $region16: #{tpu_custom_call.1} parent=1 // pred_region
      %51 = dma.done [#allocation6], 256
    $region17: #{tpu_custom_call.1} parent=1 // pred_fallthru
      _
    %s52 = sadd.s32 0, 0
    %p53 = scmp.lt.s32.totalorder %s52, 0
    %s54 = scalar_select %p53, %s52, 0
    %s55 = smul.u32 2, %s54
    %s56 = sadd.s32 0, 0
    %p57 = scmp.lt.s32.totalorder %s56, 0
    %s58 = scalar_select %p57, %s56, 0
    %s59 = smul.u32 2, %s58
    %p60 = scmp.eq.s32.totalorder 0, 0
    // Predicated region
    $region18: #{tpu_custom_call.1} parent=1 // pred_check
      %p61 = pneg %p60
    $region19: #{tpu_custom_call.1} parent=1 // pred_check_branch
      %63 = sbr.rel (%p61) target = $region21
    $region20: #{tpu_custom_call.1} parent=1 // pred_region
      %64 = vst [vmem:[#allocation7] sm:$0xff] 0.0
    $region21: #{tpu_custom_call.1} parent=1 // pred_fallthru
      _
    %v65 = vld [vmem:[#allocation2] sm:$0xff]
    %v66 = vld [vmem:[#allocation2 + $0x8] sm:$0xff]
    %v67 = vld [vmem:[#allocation5] sm:$0xff]
    %v68 = vld [vmem:[#allocation5 + $0x8] sm:$0xff]
    %v69 = vsub.f32 %v65, %v67
    %v70 = vsub.f32 %v66, %v68
    %v71 = vmul.f32 %v69, %v69
    %v72 = vmul.f32 %v70, %v70
    %v73 = vadd.f32 %v71, %v72
    %v74 = vadd.f32 %v73, 0.0
    %v75 = vld [vmem:[#allocation7] sm:$0xff]
    %v76 = vadd.f32 %v75, %v74
    %77 = vst [vmem:[#allocation7] sm:$0xff] %v76
    // Predicated region
    $region22: #{tpu_custom_call.1} parent=1 // pred_check
      _
    $region23: #{tpu_custom_call.1} parent=1 // pred_check_branch
      %79 = sbr.rel (0) target = $region25
    $region24: #{tpu_custom_call.1} parent=1 // pred_region
      %s81 = ssub.s32 128, 128
      %82 = vsyncadd [#allocation4], %s81
      %s84 = sshll.u32 [#allocation7], 4
      %s85 = int_to_ptr.vmem [resolvable:$true] %s84
      %87 = dma.vmem_to_hbm [thread:$0]  %s85, 128, %s2, [#allocation4]
    $region25: #{tpu_custom_call.1} parent=1 // pred_fallthru
      _
    // Predicated region
    $region26: #{tpu_custom_call.1} parent=1 // pred_check
      _
    $region27: #{tpu_custom_call.1} parent=1 // pred_check_branch
      %89 = sbr.rel (0) target = $region29
    $region28: #{tpu_custom_call.1} parent=1 // pred_region
      %90 = dma.done [#allocation4], 128
    $region29: #{tpu_custom_call.1} parent=1 // pred_fallthru
      _
    %91 = vsyncpa [#allocation3], 1
    %92 = vsyncpa [#allocation6], 1
    %93 = vsyncpa [#allocation4], 1

</llo_original>
